<compile_context>
chip_gen: v6e
topology: v6e:2x2x1
jax: 0.10.0
libtpu: 0.0.40
codegen_flags: <defaults>
</compile_context>

<pallas_src>
import functools

import jax
import jax.numpy as jnp
from jax.experimental import pallas as pl
from jax.experimental.pallas import tpu as pltpu


_MASK_VALUE = -1e30  # large negative instead of -inf (avoids inf-inf NaNs)


def _round_up(x, m):
    return -(-x // m) * m


def _pad_to(x, shape):
    pads = [(0, t - s) for s, t in zip(x.shape, shape)]
    if any(hi for _, hi in pads):
        return jnp.pad(x, pads)
    return x


def _flash_sdpa_kernel(q_ref, k_ref, v_ref, o_ref, m_ref, l_ref, acc_ref, *,
                       scale, kv_len, block_k, mask_kv, compute_dtype):
    kv_idx = pl.program_id(2)
    last_kv = pl.num_programs(2) - 1

    @pl.when(kv_idx == 0)
    def _():
        m_ref[...] = jnp.full_like(m_ref, _MASK_VALUE)
        l_ref[...] = jnp.zeros_like(l_ref)
        acc_ref[...] = jnp.zeros_like(acc_ref)

    q = q_ref[0]   # (tq, D)
    k = k_ref[0]   # (tk, D)
    v = v_ref[0]   # (tk, Dv)

    if scale is not None:
        # Fold the scale into Q (tq*D mults instead of tq*tk on the scores),
        # in the input precision, before the MXU cast.
        q = q * jnp.asarray(scale, dtype=q.dtype)

    # MXU-native operand dtype (bf16 for f32 inputs); stats/acc stay f32.
    q = q.astype(compute_dtype)
    k = k.astype(compute_dtype)
    v = v.astype(compute_dtype)

    # s = Q @ K^T without materializing K^T: contract both last dims on the MXU.
    s = jax.lax.dot_general(q, k, (((1,), (1,)), ((), ())),
                            preferred_element_type=jnp.float32)  # (tq, tk) f32

    def update(s_blk):
        # Online softmax update (all statistics kept in f32).
        m_prev = m_ref[...]                                        # (tq, 1)
        m_new = jnp.maximum(m_prev, jnp.max(s_blk, axis=-1, keepdims=True))
        alpha = jnp.exp(m_prev - m_new)
        p = jnp.exp(s_blk - m_new)                                 # unnormalized probs
        l_ref[...] = alpha * l_ref[...] + jnp.sum(p, axis=-1, keepdims=True)
        acc_ref[...] = alpha * acc_ref[...] + jnp.dot(
            p.astype(compute_dtype), v, preferred_element_type=jnp.float32)
        m_ref[...] = m_new

    if mask_kv:
        # Only the last kv tile contains padded key columns -> pay the
        # iota/compare/select only there (all other steps take the cheap path).
        # Invariant: Lkp - Lk < block_k, so the last tile always has >= 1 valid
        # column and m_new stays finite.
        @pl.when(kv_idx != last_kv)
        def _():
            update(s)

        @pl.when(kv_idx == last_kv)
        def _():
            col = kv_idx * block_k + jax.lax.broadcasted_iota(jnp.int32, s.shape, 1)
            update(jnp.where(col < kv_len, s, _MASK_VALUE))
    else:
        update(s)

    @pl.when(kv_idx == last_kv)
    def _():
        # Deferred normalization: one reciprocal per query row applied to the
        # (tq, Dv) accumulator. approx recip on the EUP + one Newton step.
        l = l_ref[...]
        inv = pl.reciprocal(l, approx=True)
        inv = inv * (2.0 - l * inv)
        o_ref[0] = (acc_ref[...] * inv).astype(o_ref.dtype)


def scaled_dot_product_attention(Q, K, V, scale=None, *, use_bf16_mxu=True):
    """Pallas TPU flash-style SDPA.

    Q: (B, Lq, D), K: (B, Lk, D), V: (B, Lk, Dv)  ->  (B, Lq, Dv)
    `scale` mirrors the PyTorch module's `if scale:` truthiness check.
    `use_bf16_mxu` casts matmul operands of f32 inputs to bf16 (MXU-native).
    """
    B, Lq, D = Q.shape
    Bk, Lk, Dk = K.shape
    Bv, Lkv, Dv = V.shape
    assert B == Bk == Bv and D == Dk and Lk == Lkv

    # Mimic PyTorch's `if scale:` (falsy scale -> no scaling).
    scale_val = scale if scale else None

    compute_dtype = (jnp.bfloat16
                     if (use_bf16_mxu and Q.dtype == jnp.float32) else Q.dtype)

    itemsize = jnp.dtype(Q.dtype).itemsize
    sublane = {4: 8, 2: 16, 1: 32}.get(itemsize, 8)   # dtype min-tile rows

    # --- q tiling ----------------------------------------------------------
    if Lq <= 512:
        block_q = Lq  # full-dim block: no Q padding, no output slice
        # v7x has 2 TensorCores; only 'parallel' axes shard across them. With
        # B == 1 make sure the parallel extent is >= 2 by splitting the q dim.
        if B == 1 and Lq >= 2 * sublane:
            block_q = _round_up(-(-Lq // 2), sublane)
    else:
        block_q = 512
    Lqp = _round_up(Lq, block_q)

    # --- kv tiling ---------------------------------------------------------
    if Lk <= 512:
        block_k = Lk          # single full-dim kv tile: no padding, no mask
    else:
        # Pick the candidate that minimizes padded (masked) MXU work;
        # tie-break towards the largest tile (fewer grid steps).
        candidates = (512, 256, 128)
        block_k = min(candidates, key=lambda c: (_round_up(Lk, c), -c))
    Lkp = _round_up(Lk, block_k)
    mask_kv = (Lkp != Lk)     # padded keys must be masked out of the softmax

    Qp = _pad_to(Q, (B, Lqp, D))
    Kp = _pad_to(K, (B, Lkp, D))
    Vp = _pad_to(V, (B, Lkp, Dv))

    kernel = functools.partial(
        _flash_sdpa_kernel, scale=scale_val, kv_len=Lk, block_k=block_k,
        mask_kv=mask_kv, compute_dtype=compute_dtype)

    # Explicit VMEM budget (double-buffered tiles + scratch), so larger tiles
    # stay inside v7x's smaller scoped/physical VMEM without silent fallback.
    lane_p = lambda n: _round_up(n, 128)
    sub_p = lambda n: _round_up(n, sublane)
    tile_bytes = itemsize * (sub_p(block_q) * lane_p(D)      # Q block
                             + sub_p(block_k) * lane_p(D)    # K block
                             + sub_p(block_k) * lane_p(Dv)   # V block
                             + sub_p(block_q) * lane_p(Dv))  # O block
    scratch_bytes = 4 * _round_up(block_q, 8) * (lane_p(Dv) + 2 * 128)
    vmem_limit = int(min(100 * 2**20,
                         max(32 * 2**20, 2 * (2 * tile_bytes) + scratch_bytes)))

    out_p = pl.pallas_call(
        kernel,
        out_shape=jax.ShapeDtypeStruct((B, Lqp, Dv), Q.dtype),
        grid_spec=pltpu.PrefetchScalarGridSpec(
            num_scalar_prefetch=0,
            grid=(B, Lqp // block_q, Lkp // block_k),
            in_specs=[
                # Last dims equal the full array dims (no 128-padding of D/Dv).
                # TODO(synk): if profiling shows exposed K/V DMA on v6e, add
                # pipeline_mode=pl.Buffered(3) on the K and V specs.
                pl.BlockSpec((1, block_q, D), lambda b, qi, ki: (b, qi, 0)),
                pl.BlockSpec((1, block_k, D), lambda b, qi, ki: (b, ki, 0)),
                pl.BlockSpec((1, block_k, Dv), lambda b, qi, ki: (b, ki, 0)),
            ],
            out_specs=pl.BlockSpec((1, block_q, Dv),
                                   lambda b, qi, ki: (b, qi, 0)),
            scratch_shapes=[
                pltpu.VMEM((block_q, 1), jnp.float32),     # running max m
                pltpu.VMEM((block_q, 1), jnp.float32),     # running sum l
                pltpu.VMEM((block_q, Dv), jnp.float32),    # f32 accumulator
            ],
        ),
        compiler_params=pltpu.CompilerParams(
            dimension_semantics=("parallel", "parallel", "arbitrary"),
            vmem_limit_bytes=vmem_limit,
        ),
    )(Qp, Kp, Vp)

    if Lqp != Lq:
        out_p = out_p[:, :Lq, :]
    return out_p


def _reference(Q, K, V, scale=None):
    att = jnp.einsum("bqd,bkd->bqk", Q, K)
    if scale:
        att = att * scale
    att = jax.nn.softmax(att, axis=-1)
    return jnp.einsum("bqk,bkd->bqd", att, V)


if __name__ == "__main__":
    key = jax.random.PRNGKey(0)
    kq, kk, kv_ = jax.random.split(key, 3)

    # Primary shapes consistent with the module: batch=2, seq=8, hidden=32.
    B, L, D = 2, 8, 32
    Q = jax.random.normal(kq, (B, L, D), dtype=jnp.float32)
    K = jax.random.normal(kk, (B, L, D), dtype=jnp.float32)
    V = jax.random.normal(kv_, (B, L, D), dtype=jnp.float32)
    scale = 1.0 / (D ** 0.5)
    ref = _reference(Q, K, V, scale=scale)

    # Default (bf16-MXU) path: flash-attn-level accuracy vs the f32 reference.
    out = jax.block_until_ready(scaled_dot_product_attention(Q, K, V, scale=scale))
    assert out.shape == (B, L, D)
    assert jnp.allclose(out, ref, atol=3e-2, rtol=3e-2), "mismatch (bf16 MXU path)"

    # Full-f32 path: tight match (validates the online-softmax algorithm).
    out_f32 = jax.block_until_ready(
        scaled_dot_product_attention(Q, K, V, scale=scale, use_bf16_mxu=False))
    assert jnp.allclose(out_f32, ref, atol=1e-4, rtol=1e-4), "mismatch (f32 path)"

    # scale=None path (mirrors the module's `if scale:` truthiness check).
    out_ns = jax.block_until_ready(
        scaled_dot_product_attention(Q, K, V, use_bf16_mxu=False))
    ref_ns = _reference(Q, K, V)
    assert jnp.allclose(out_ns, ref_ns, atol=1e-4, rtol=1e-4), "mismatch (no-scale)"

    # Multi-kv-tile online softmax + kv-tail masking + ragged-Lq pad/slice.
    B2, L2, D2 = 2, 650, 64
    k1, k2, k3 = jax.random.split(jax.random.PRNGKey(1), 3)
    Q2 = jax.random.normal(k1, (B2, L2, D2), dtype=jnp.float32)
    K2 = jax.random.normal(k2, (B2, L2, D2), dtype=jnp.float32)
    V2 = jax.random.normal(k3, (B2, L2, D2), dtype=jnp.float32)
    s2 = 1.0 / (D2 ** 0.5)
    ref2 = _reference(Q2, K2, V2, scale=s2)
    out2 = jax.block_until_ready(
        scaled_dot_product_attention(Q2, K2, V2, scale=s2, use_bf16_mxu=False))
    assert jnp.allclose(out2, ref2, atol=1e-4, rtol=1e-4), "mismatch (tiled f32)"
    out2b = jax.block_until_ready(
        scaled_dot_product_attention(Q2, K2, V2, scale=s2))
    assert jnp.allclose(out2b, ref2, atol=3e-2, rtol=3e-2), "mismatch (tiled bf16)"

    # B=1 split-q path (keeps both v7x TensorCores busy).
    B3, L3, D3 = 1, 64, 32
    k4, k5, k6 = jax.random.split(jax.random.PRNGKey(2), 3)
    Q3 = jax.random.normal(k4, (B3, L3, D3), dtype=jnp.float32)
    K3 = jax.random.normal(k5, (B3, L3, D3), dtype=jnp.float32)
    V3 = jax.random.normal(k6, (B3, L3, D3), dtype=jnp.float32)
    s3 = 1.0 / (D3 ** 0.5)
    out3 = jax.block_until_ready(
        scaled_dot_product_attention(Q3, K3, V3, scale=s3, use_bf16_mxu=False))
    ref3 = _reference(Q3, K3, V3, scale=s3)
    assert jnp.allclose(out3, ref3, atol=1e-4, rtol=1e-4), "mismatch (B=1 split-q)"

    print("KERNEL_OK")
</pallas_src>

<mosaic_0001>
module attributes {stable_mosaic.version = 11 : i64} {
  func.func @_flash_sdpa_kernel(%arg0: i32, %arg1: i32, %arg2: i32, %arg3: memref<1x8x32xf32, #tpu.memory_space<vmem>>, %arg4: memref<1x8x32xf32, #tpu.memory_space<vmem>>, %arg5: memref<1x8x32xf32, #tpu.memory_space<vmem>>, %arg6: memref<1x8x32xf32, #tpu.memory_space<vmem>>, %arg7: memref<8x1xf32, #tpu.memory_space<vmem>>, %arg8: memref<8x1xf32, #tpu.memory_space<vmem>>, %arg9: memref<8x32xf32, #tpu.memory_space<vmem>>) attributes {dimension_semantics = [#tpu.dimension_semantics<parallel>, #tpu.dimension_semantics<parallel>, #tpu.dimension_semantics<arbitrary>], iteration_bounds = array<i64: 2, 1, 1>, scalar_prefetch = 0 : i64, scratch_operands = 3 : i64, tpu.core_type = #tpu.core_type<tc>, window_params = [{transform_indices = @transform_0, window_bounds = array<i64: 1, 8, 32>}, {transform_indices = @transform_1, window_bounds = array<i64: 1, 8, 32>}, {transform_indices = @transform_2, window_bounds = array<i64: 1, 8, 32>}, {transform_indices = @transform_3, window_bounds = array<i64: 1, 8, 32>}]} {
    %c0_i32 = arith.constant 0 : i32
    %0 = arith.cmpi eq, %arg2, %c0_i32 : i32
    %1 = arith.extui %0 : i1 to i32
    %c0_i32_0 = arith.constant 0 : i32
    %2 = arith.cmpi ne, %1, %c0_i32_0 : i32
    scf.if %2 {
      %cst_27 = arith.constant -1.000000e+30 : f32
      %41 = vector.broadcast %cst_27 : f32 to vector<8x1xf32>
      %c0_28 = arith.constant 0 : index
      %c0_29 = arith.constant 0 : index
      %42 = vector.load %arg7[%c0_28, %c0_29] : memref<8x1xf32, #tpu.memory_space<vmem>>, vector<8x1xf32>
      tpu.vector_store %arg7[%c0_28, %c0_29], %41 {strides = array<i32>} : memref<8x1xf32, #tpu.memory_space<vmem>>, vector<8x1xf32>,
      %cst_30 = arith.constant 0.000000e+00 : f32
      %43 = vector.broadcast %cst_30 : f32 to vector<8x1xf32>
      %c0_31 = arith.constant 0 : index
      %c0_32 = arith.constant 0 : index
      %44 = vector.load %arg8[%c0_31, %c0_32] : memref<8x1xf32, #tpu.memory_space<vmem>>, vector<8x1xf32>
      tpu.vector_store %arg8[%c0_31, %c0_32], %43 {strides = array<i32>} : memref<8x1xf32, #tpu.memory_space<vmem>>, vector<8x1xf32>,
      %cst_33 = arith.constant 0.000000e+00 : f32
      %45 = vector.broadcast %cst_33 : f32 to vector<8x32xf32>
      %c0_34 = arith.constant 0 : index
      %c0_35 = arith.constant 0 : index
      %46 = vector.load %arg9[%c0_34, %c0_35] : memref<8x32xf32, #tpu.memory_space<vmem>>, vector<8x32xf32>
      tpu.vector_store %arg9[%c0_34, %c0_35], %45 {strides = array<i32>} : memref<8x32xf32, #tpu.memory_space<vmem>>, vector<8x32xf32>,
    } else {
    }
    %c0 = arith.constant 0 : index
    %c0_1 = arith.constant 0 : index
    %c0_2 = arith.constant 0 : index
    %3 = vector.load %arg3[%c0, %c0_1, %c0_2] : memref<1x8x32xf32, #tpu.memory_space<vmem>>, vector<1x8x32xf32>
    %4 = vector.shape_cast %3 : vector<1x8x32xf32> to vector<8x32xf32>
    %c0_3 = arith.constant 0 : index
    %c0_4 = arith.constant 0 : index
    %c0_5 = arith.constant 0 : index
    %5 = vector.load %arg4[%c0_3, %c0_4, %c0_5] : memref<1x8x32xf32, #tpu.memory_space<vmem>>, vector<1x8x32xf32>
    %6 = vector.shape_cast %5 : vector<1x8x32xf32> to vector<8x32xf32>
    %c0_6 = arith.constant 0 : index
    %c0_7 = arith.constant 0 : index
    %c0_8 = arith.constant 0 : index
    %7 = vector.load %arg5[%c0_6, %c0_7, %c0_8] : memref<1x8x32xf32, #tpu.memory_space<vmem>>, vector<1x8x32xf32>
    %8 = vector.shape_cast %7 : vector<1x8x32xf32> to vector<8x32xf32>
    %cst = arith.constant 0.176776692 : f32
    %9 = vector.broadcast %cst : f32 to vector<8x32xf32>
    %10 = arith.mulf %4, %9 : vector<8x32xf32>
    %11 = arith.truncf %10 : vector<8x32xf32> to vector<8x32xbf16>
    %12 = arith.truncf %6 : vector<8x32xf32> to vector<8x32xbf16>
    %13 = arith.truncf %8 : vector<8x32xf32> to vector<8x32xbf16>
    %cst_9 = arith.constant dense<0.000000e+00> : vector<8x8xf32>
    %14 = tpu.matmul %11, %12, %cst_9 {dimension_numbers = #tpu.dot_dimension_numbers<[1], [1], [0], [0], [0, 0, 1, 0], [], []>} : vector<8x32xbf16>, vector<8x32xbf16>, vector<8x8xf32> -> vector<8x8xf32>
    %c0_10 = arith.constant 0 : index
    %c0_11 = arith.constant 0 : index
    %15 = vector.load %arg7[%c0_10, %c0_11] : memref<8x1xf32, #tpu.memory_space<vmem>>, vector<8x1xf32>
    %cst_12 = arith.constant dense<0xFF800000> : vector<8xf32>
    %16 = vector.multi_reduction <maximumf>, %14, %cst_12 [1] : vector<8x8xf32> to vector<8xf32>
    %17 = vector.shape_cast %16 : vector<8xf32> to vector<8x1xf32>
    %18 = arith.maximumf %15, %17 : vector<8x1xf32>
    %19 = arith.subf %15, %18 : vector<8x1xf32>
    %20 = math.exp %19 : vector<8x1xf32>
    %21 = vector.broadcast %18 : vector<8x1xf32> to vector<8x8xf32>
    %22 = arith.subf %14, %21 : vector<8x8xf32>
    %23 = math.exp %22 : vector<8x8xf32>
    %c0_13 = arith.constant 0 : index
    %c0_14 = arith.constant 0 : index
    %24 = vector.load %arg8[%c0_13, %c0_14] : memref<8x1xf32, #tpu.memory_space<vmem>>, vector<8x1xf32>
    %25 = arith.mulf %20, %24 : vector<8x1xf32>
    %cst_15 = arith.constant dense<0.000000e+00> : vector<8xf32>
    %26 = vector.multi_reduction <add>, %23, %cst_15 [1] : vector<8x8xf32> to vector<8xf32>
    %27 = vector.shape_cast %26 : vector<8xf32> to vector<8x1xf32>
    %28 = arith.addf %25, %27 : vector<8x1xf32>
    %c0_16 = arith.constant 0 : index
    %c0_17 = arith.constant 0 : index
    %29 = vector.load %arg8[%c0_16, %c0_17] : memref<8x1xf32, #tpu.memory_space<vmem>>, vector<8x1xf32>
    tpu.vector_store %arg8[%c0_16, %c0_17], %28 {strides = array<i32>} : memref<8x1xf32, #tpu.memory_space<vmem>>, vector<8x1xf32>,
    %c0_18 = arith.constant 0 : index
    %c0_19 = arith.constant 0 : index
    %30 = vector.load %arg9[%c0_18, %c0_19] : memref<8x32xf32, #tpu.memory_space<vmem>>, vector<8x32xf32>
    %31 = vector.broadcast %20 : vector<8x1xf32> to vector<8x32xf32>
    %32 = arith.mulf %31, %30 : vector<8x32xf32>
    %33 = arith.truncf %23 : vector<8x8xf32> to vector<8x8xbf16>
    %cst_20 = arith.constant dense<0.000000e+00> : vector<8x32xf32>
    %34 = tpu.matmul %33, %13, %cst_20 {dimension_numbers = #tpu.dot_dimension_numbers<[1], [0], [0], [1], [0, 0, 1, 1], [], []>} : vector<8x8xbf16>, vector<8x32xbf16>, vector<8x32xf32> -> vector<8x32xf32>
    %35 = arith.addf %32, %34 : vector<8x32xf32>
    %c0_21 = arith.constant 0 : index
    %c0_22 = arith.constant 0 : index
    %36 = vector.load %arg9[%c0_21, %c0_22] : memref<8x32xf32, #tpu.memory_space<vmem>>, vector<8x32xf32>
    tpu.vector_store %arg9[%c0_21, %c0_22], %35 {strides = array<i32>} : memref<8x32xf32, #tpu.memory_space<vmem>>, vector<8x32xf32>,
    %c0_23 = arith.constant 0 : index
    %c0_24 = arith.constant 0 : index
    %37 = vector.load %arg7[%c0_23, %c0_24] : memref<8x1xf32, #tpu.memory_space<vmem>>, vector<8x1xf32>
    tpu.vector_store %arg7[%c0_23, %c0_24], %18 {strides = array<i32>} : memref<8x1xf32, #tpu.memory_space<vmem>>, vector<8x1xf32>,
    %c0_i32_25 = arith.constant 0 : i32
    %38 = arith.cmpi eq, %arg2, %c0_i32_25 : i32
    %39 = arith.extui %38 : i1 to i32
    %c0_i32_26 = arith.constant 0 : i32
    %40 = arith.cmpi ne, %39, %c0_i32_26 : i32
    scf.if %40 {
      %c0_27 = arith.constant 0 : index
      %c0_28 = arith.constant 0 : index
      %41 = vector.load %arg8[%c0_27, %c0_28] : memref<8x1xf32, #tpu.memory_space<vmem>>, vector<8x1xf32>
      %42 = tpu.reciprocal %41 {approx = true} : vector<8x1xf32> -> vector<8x1xf32>
      %43 = arith.mulf %41, %42 : vector<8x1xf32>
      %cst_29 = arith.constant 2.000000e+00 : f32
      %44 = vector.broadcast %cst_29 : f32 to vector<8x1xf32>
      %45 = arith.subf %44, %43 : vector<8x1xf32>
      %46 = arith.mulf %42, %45 : vector<8x1xf32>
      %c0_30 = arith.constant 0 : index
      %c0_31 = arith.constant 0 : index
      %47 = vector.load %arg9[%c0_30, %c0_31] : memref<8x32xf32, #tpu.memory_space<vmem>>, vector<8x32xf32>
      %48 = vector.broadcast %46 : vector<8x1xf32> to vector<8x32xf32>
      %49 = arith.mulf %47, %48 : vector<8x32xf32>
      %c0_32 = arith.constant 0 : index
      %c0_33 = arith.constant 0 : index
      %c0_34 = arith.constant 0 : index
      %50 = vector.load %arg6[%c0_32, %c0_33, %c0_34] : memref<1x8x32xf32, #tpu.memory_space<vmem>>, vector<1x8x32xf32>
      %51 = vector.shape_cast %50 : vector<1x8x32xf32> to vector<8x32xf32>
      %52 = vector.shape_cast %49 : vector<8x32xf32> to vector<1x8x32xf32>
      tpu.vector_store %arg6[%c0_32, %c0_33, %c0_34], %52 {strides = array<i32>} : memref<1x8x32xf32, #tpu.memory_space<vmem>>, vector<1x8x32xf32>,
    } else {
    }
    return
  }
  func.func @transform_0(%arg0: i32, %arg1: i32, %arg2: i32) -> (i32, i32, i32) {
    %c0_i32 = arith.constant 0 : i32
    %c0_i32_0 = arith.constant 0 : i32
    return %arg0, %arg1, %c0_i32 : i32, i32, i32
  }
  func.func @transform_1(%arg0: i32, %arg1: i32, %arg2: i32) -> (i32, i32, i32) {
    %c0_i32 = arith.constant 0 : i32
    %c0_i32_0 = arith.constant 0 : i32
    return %arg0, %arg2, %c0_i32 : i32, i32, i32
  }
  func.func @transform_2(%arg0: i32, %arg1: i32, %arg2: i32) -> (i32, i32, i32) {
    %c0_i32 = arith.constant 0 : i32
    %c0_i32_0 = arith.constant 0 : i32
    return %arg0, %arg2, %c0_i32 : i32, i32, i32
  }
  func.func @transform_3(%arg0: i32, %arg1: i32, %arg2: i32) -> (i32, i32, i32) {
    %c0_i32 = arith.constant 0 : i32
    %c0_i32_0 = arith.constant 0 : i32
    return %arg0, %arg1, %c0_i32 : i32, i32, i32
  }
}

</mosaic_0001>

<llo_original>
// kernel: tpu_custom_call.1
$region0: #{tpu_custom_call.1}
  #allocation0 [shape = 'u32[]', space=smem, size = 0x4, offset = 0x4, fixed_abs, tag = 'smem constant byte address 0x4 - core index']
  #allocation1 [shape = 'u32[144,128]{1,0:T(1,128)}', space=vmem, size = 0x12000, scoped, tag = 'internal scratch']
  #allocation2 [shape = 'f32[8,1]{1,0:T(8,128)}', space=vmem, size = 0x1000, scoped, tag = 'scratch operand']
  #allocation3 [shape = 'f32[8,1]{1,0:T(8,128)}', space=vmem, size = 0x1000, scoped, tag = 'scratch operand']
  #allocation4 [shape = 'f32[8,32]{1,0:T(8,128)}', space=vmem, size = 0x1000, scoped, tag = 'scratch operand']
  %s0 = inlined_call_operand.hbm [shape: f32[2,8,32], index: 0, kind: input, shape index: {}]
  %s1 = inlined_call_operand.hbm [shape: f32[2,8,32], index: 1, kind: input, shape index: {}]
  %s2 = inlined_call_operand.hbm [shape: f32[2,8,32], index: 2, kind: input, shape index: {}]
  %s3 = inlined_call_operand.hbm [shape: f32[2,8,32], index: 3, kind: output, shape index: {}]
  %s4 = sld [smem:[#allocation0]]
  $region65: #{tpu_custom_call.1} parent=0
    _
  %s6 = ssub.s32 1, %s4
  %s7 = scalar_select 0, %s6, %s4
  $region1: #{tpu_custom_call.1} parent=0
    #allocation5 [shape = 'u8[8192]{0}', space=vmem, size = 0x2000, scoped, tag = 'input window, operand 0']
    #allocation6 [shape = 's32[2]{0}', space=sflag, size = 0x8, scoped, tag = 'scoped memory for tpu_custom_call.1']
    #allocation7 [shape = 's32[2]{0}', space=sflag, size = 0x8, scoped, tag = 'scoped memory for tpu_custom_call.1']
    #allocation8 [shape = 'u8[8192]{0}', space=vmem, size = 0x2000, scoped, tag = 'input window, operand 1']
    #allocation9 [shape = 's32[2]{0}', space=sflag, size = 0x8, scoped, tag = 'scoped memory for tpu_custom_call.1']
    #allocation10 [shape = 'u8[8192]{0}', space=vmem, size = 0x2000, scoped, tag = 'input window, operand 2']
    #allocation11 [shape = 'u8[8192]{0}', space=vmem, size = 0x2000, scoped, tag = 'output window, operand 0']
    %8 = vsyncpa [#allocation6], 0
    %s9 = scalar_lea.sflag [#allocation6], 1
    %10 = vsyncpa %s9, 0
    %11 = vsyncpa [#allocation9], 0
    %s12 = scalar_lea.sflag [#allocation9], 1
    %13 = vsyncpa %s12, 0
    %14 = vsyncpa [#allocation7], 0
    %s15 = scalar_lea.sflag [#allocation7], 1
    %16 = vsyncpa %s15, 0
    loop: start=0, step=1, limit=4
    $region2: #{tpu_custom_call.1} parent=1 // loop_pre_header
      _
    $region3: #{tpu_custom_call.1} parent=1 // loop_header
      %s18 = sphi 0, %s22
      %p19 = scmp.ge.s32.totalorder %s18, 4
      %s25 = sphi 0, %s44
      %s26 = sphi 0, %s40
      %s27 = sphi 0, %s36
      %s28 = sphi 0, %s25
      %s29 = sphi 0, %s26
      %s30 = sphi 0, %s27
      %s31 = sphi 0, %s28
      %s32 = sphi 0, %s29
      %s33 = sphi 0, %s30
      %s49 = sphi 0, %s51
      %s52 = sphi 0, %s49
      %s53 = sphi 0, %s52
      %s69 = sphi 0, %s53
      %s77 = sphi 0, %s79
      %s80 = sphi 0, %s77
      %s81 = sphi 0, %s80
      %s97 = sphi 0, %s81
      %s105 = sphi 0, %s107
      %s108 = sphi 0, %s105
      %s109 = sphi 0, %s108
      %s125 = sphi 0, %s109
      %s133 = sphi 0, %s135
      %s136 = sphi 0, %s133
      %s137 = sphi 0, %s136
      %s153 = sphi 0, %s137
    $region4: #{tpu_custom_call.1} parent=1 // loop_header_branch
      %21 = sbr.rel (%p19) target = $region8
    $region5: #{tpu_custom_call.1} parent=1 // loop_body
      %s23 = ssub.s32 %s18, 1
      %s24 = ssub.s32 %s18, 2
      %s34 = sadd.s32 1, %s27
      %p35 = scmp.ge.s32.totalorder %s34, 1
      %s36 = scalar_select %p35, 0, %s34
      %s37 = sadd.s32 1, %s26
      %s38 = scalar_select %p35, %s37, %s26
      %p39 = scmp.ge.s32.totalorder %s38, 1
      %s40 = scalar_select %p39, 0, %s38
      %s41 = sadd.s32 1, %s25
      %s42 = scalar_select %p39, %s41, %s25
      %p43 = scmp.ge.s32.totalorder %s42, 2
      %s44 = scalar_select %p43, 0, %s42
      %s45 = ssub.s32 %s25, %s44
      %s46 = ssub.s32 %s26, %s40
      %s47 = sor.u32 %s45, %s46
      %p48 = scmp.eq.s32.totalorder %s47, 0
      %s50 = sadd.s32 %s49, 1
      %s51 = scalar_select %p48, %s49, %s50
      %p54 = pneg %p48
      %p55 = scmp.eq.s32.totalorder %s18, 1
      %p56 = por %p54, %p55
      %p57 = scmp.ne.s32.totalorder %s49, %s52
      %p58 = scmp.eq.s32.totalorder %s18, 0
      %p59 = por %p57, %p58
      %p60 = scmp.ne.s32.totalorder %s49, %s52
      %p61 = scmp.eq.s32.totalorder %s23, 1
      %p62 = por %p60, %p61
      %p63 = scmp.ne.s32.totalorder %s52, %s53
      %p64 = scmp.eq.s32.totalorder %s23, 0
      %p65 = por %p63, %p64
      %p66 = scmp.ne.s32.totalorder %s52, %s53
      %p67 = scmp.eq.s32.totalorder %s24, 1
      %p68 = por %p66, %p67
      %p70 = scmp.ne.s32.totalorder %s53, %s69
      %p71 = scmp.eq.s32.totalorder %s24, 0
      %p72 = por %p70, %p71
      %s73 = ssub.s32 %s25, %s44
      %s74 = ssub.s32 %s27, %s36
      %s75 = sor.u32 %s73, %s74
      %p76 = scmp.eq.s32.totalorder %s75, 0
      %s78 = sadd.s32 %s77, 1
      %s79 = scalar_select %p76, %s77, %s78
      %p82 = pneg %p76
      %p83 = scmp.eq.s32.totalorder %s18, 1
      %p84 = por %p82, %p83
      %p85 = scmp.ne.s32.totalorder %s77, %s80
      %p86 = scmp.eq.s32.totalorder %s18, 0
      %p87 = por %p85, %p86
      %p88 = scmp.ne.s32.totalorder %s77, %s80
      %p89 = scmp.eq.s32.totalorder %s23, 1
      %p90 = por %p88, %p89
      %p91 = scmp.ne.s32.totalorder %s80, %s81
      %p92 = scmp.eq.s32.totalorder %s23, 0
      %p93 = por %p91, %p92
      %p94 = scmp.ne.s32.totalorder %s80, %s81
      %p95 = scmp.eq.s32.totalorder %s24, 1
      %p96 = por %p94, %p95
      %p98 = scmp.ne.s32.totalorder %s81, %s97
      %p99 = scmp.eq.s32.totalorder %s24, 0
      %p100 = por %p98, %p99
      %s101 = ssub.s32 %s25, %s44
      %s102 = ssub.s32 %s27, %s36
      %s103 = sor.u32 %s101, %s102
      %p104 = scmp.eq.s32.totalorder %s103, 0
      %s106 = sadd.s32 %s105, 1
      %s107 = scalar_select %p104, %s105, %s106
      %p110 = pneg %p104
      %p111 = scmp.eq.s32.totalorder %s18, 1
      %p112 = por %p110, %p111
      %p113 = scmp.ne.s32.totalorder %s105, %s108
      %p114 = scmp.eq.s32.totalorder %s18, 0
      %p115 = por %p113, %p114
      %p116 = scmp.ne.s32.totalorder %s105, %s108
      %p117 = scmp.eq.s32.totalorder %s23, 1
      %p118 = por %p116, %p117
      %p119 = scmp.ne.s32.totalorder %s108, %s109
      %p120 = scmp.eq.s32.totalorder %s23, 0
      %p121 = por %p119, %p120
      %p122 = scmp.ne.s32.totalorder %s108, %s109
      %p123 = scmp.eq.s32.totalorder %s24, 1
      %p124 = por %p122, %p123
      %p126 = scmp.ne.s32.totalorder %s109, %s125
      %p127 = scmp.eq.s32.totalorder %s24, 0
      %p128 = por %p126, %p127
      %s129 = ssub.s32 %s25, %s44
      %s130 = ssub.s32 %s26, %s40
      %s131 = sor.u32 %s129, %s130
      %p132 = scmp.eq.s32.totalorder %s131, 0
      %s134 = sadd.s32 %s133, 1
      %s135 = scalar_select %p132, %s133, %s134
      %p138 = pneg %p132
      %p139 = scmp.eq.s32.totalorder %s18, 1
      %p140 = por %p138, %p139
      %p141 = scmp.ne.s32.totalorder %s133, %s136
      %p142 = scmp.eq.s32.totalorder %s18, 0
      %p143 = por %p141, %p142
      %p144 = scmp.ne.s32.totalorder %s133, %s136
      %p145 = scmp.eq.s32.totalorder %s23, 1
      %p146 = por %p144, %p145
      %p147 = scmp.ne.s32.totalorder %s136, %s137
      %p148 = scmp.eq.s32.totalorder %s23, 0
      %p149 = por %p147, %p148
      %p150 = scmp.ne.s32.totalorder %s136, %s137
      %p151 = scmp.eq.s32.totalorder %s24, 1
      %p152 = por %p150, %p151
      %p154 = scmp.ne.s32.totalorder %s137, %s153
      %p155 = scmp.eq.s32.totalorder %s24, 0
      %p156 = por %p154, %p155
      %p157 = scmp.le.s32.totalorder 1, %s18
      %p158 = scmp.lt.s32.totalorder %s18, 3
      %p159 = pnand %p157, %p158
      %p160 = pneg %p159
      // Predicated region
      $region9: #{tpu_custom_call.1} parent=5 // pred_check
        _
      $region10: #{tpu_custom_call.1} parent=5 // pred_check_branch
        %162 = sbr.rel (%p159) target = $region12
      $region11: #{tpu_custom_call.1} parent=5 // pred_region
        %s163 = ssub.s32 %s18, 1
      $region12: #{tpu_custom_call.1} parent=5 // pred_fallthru
        _
      %p164 = scmp.lt.s32.totalorder %s18, 2
      // Predicated region
      $region13: #{tpu_custom_call.1} parent=5 // pred_check
        %p165 = pneg %p164
      $region14: #{tpu_custom_call.1} parent=5 // pred_check_branch
        %167 = sbr.rel (%p165) target = $region16
      $region15: #{tpu_custom_call.1} parent=5 // pred_region
        // Predicated region
        $region17: #{tpu_custom_call.1} parent=15 // pred_check
          %p168 = pneg %p59
        $region18: #{tpu_custom_call.1} parent=15 // pred_check_branch
          %170 = sbr.rel (%p168) target = $region20
        $region19: #{tpu_custom_call.1} parent=15 // pred_region
          %s171 = sand.u32 %s49, 1
          %s172 = scalar_lea.sflag [#allocation6], %s171
          %s173 = sand.u32 %s49, 1
          %s174 = smul.addr %s173, 8
          %s175 = scalar_lea.vmem [#allocation5], %s174
          %s177 = ssub.s32 128, 128
          %178 = vsyncadd %s172, %s177
          %s179 = sadd.s32 %s26, %s25
          %s180 = smul.addr %s179, 128
          %s181 = scalar_lea.hbm %s0, %s180
          %s183 = sshll.u32 %s175, 4
          %s184 = int_to_ptr.vmem [resolvable:$true] %s183
          %186 = dma.hbm_to_vmem [thread:$0]  %s181, 128, %s184, %s172
        $region20: #{tpu_custom_call.1} parent=15 // pred_fallthru
          _
        // Predicated region
        $region21: #{tpu_custom_call.1} parent=15 // pred_check
          %p187 = pneg %p87
        $region22: #{tpu_custom_call.1} parent=15 // pred_check_branch
          %189 = sbr.rel (%p187) target = $region24
        $region23: #{tpu_custom_call.1} parent=15 // pred_region
          %s190 = sand.u32 %s18, 1
          %s191 = scalar_lea.sflag [#allocation9], %s190
          %s192 = sand.u32 %s77, 1
          %s193 = smul.addr %s192, 8
          %s194 = scalar_lea.vmem [#allocation8], %s193
          %s196 = ssub.s32 128, 128
          %197 = vsyncadd %s191, %s196
          %s198 = sadd.s32 %s27, %s25
          %s199 = smul.addr %s198, 128
          %s200 = scalar_lea.hbm %s1, %s199
          %s202 = sshll.u32 %s194, 4
          %s203 = int_to_ptr.vmem [resolvable:$true] %s202
          %205 = dma.hbm_to_vmem [thread:$0]  %s200, 128, %s203, %s191
        $region24: #{tpu_custom_call.1} parent=15 // pred_fallthru
          _
        // Predicated region
        $region25: #{tpu_custom_call.1} parent=15 // pred_check
          %p206 = pneg %p115
        $region26: #{tpu_custom_call.1} parent=15 // pred_check_branch
          %208 = sbr.rel (%p206) target = $region28
        $region27: #{tpu_custom_call.1} parent=15 // pred_region
          %s209 = sand.u32 %s18, 1
          %s210 = scalar_lea.sflag [#allocation9], %s209
          %s211 = sand.u32 %s105, 1
          %s212 = smul.addr %s211, 8
          %s213 = scalar_lea.vmem [#allocation10], %s212
          %s215 = ssub.s32 128, 128
          %216 = vsyncadd %s210, %s215
          %s217 = sadd.s32 %s27, %s25
          %s218 = smul.addr %s217, 128
          %s219 = scalar_lea.hbm %s2, %s218
          %s221 = sshll.u32 %s213, 4
          %s222 = int_to_ptr.vmem [resolvable:$true] %s221
          %224 = dma.hbm_to_vmem [thread:$0]  %s219, 128, %s222, %s210
        $region28: #{tpu_custom_call.1} parent=15 // pred_fallthru
          _
      $region16: #{tpu_custom_call.1} parent=5 // pred_fallthru
        _
      %p225 = scmp.le.s32.totalorder 1, %s18
      %p226 = scmp.lt.s32.totalorder %s18, 3
      %p227 = pnand %p225, %p226
      %p228 = pneg %p227
      // Predicated region
      $region29: #{tpu_custom_call.1} parent=5 // pred_check
        _
      $region30: #{tpu_custom_call.1} parent=5 // pred_check_branch
        %230 = sbr.rel (%p227) target = $region32
      $region31: #{tpu_custom_call.1} parent=5 // pred_region
        %s231 = ssub.s32 %s18, 1
        %s232 = sand.u32 %s52, 1
        %s233 = scalar_lea.sflag [#allocation6], %s232
        %s234 = sand.u32 %s52, 1
        %s235 = smul.addr %s234, 8
        %s236 = scalar_lea.vmem [#allocation5], %s235
        // Predicated region
        $region33: #{tpu_custom_call.1} parent=31 // pred_check
          %p237 = pneg %p65
        $region34: #{tpu_custom_call.1} parent=31 // pred_check_branch
          %239 = sbr.rel (%p237) target = $region36
        $region35: #{tpu_custom_call.1} parent=31 // pred_region
          %240 = dma.done %s233, 128
        $region36: #{tpu_custom_call.1} parent=31 // pred_fallthru
          _
        %s241 = sand.u32 %s23, 1
        %s242 = scalar_lea.sflag [#allocation9], %s241
        %s243 = sand.u32 %s80, 1
        %s244 = smul.addr %s243, 8
        %s245 = scalar_lea.vmem [#allocation8], %s244
        // Predicated region
        $region37: #{tpu_custom_call.1} parent=31 // pred_check
          %p246 = pneg %p93
        $region38: #{tpu_custom_call.1} parent=31 // pred_check_branch
          %248 = sbr.rel (%p246) target = $region40
        $region39: #{tpu_custom_call.1} parent=31 // pred_region
          %249 = dma.done %s242, 128
        $region40: #{tpu_custom_call.1} parent=31 // pred_fallthru
          _
        %s250 = sand.u32 %s23, 1
        %s251 = scalar_lea.sflag [#allocation9], %s250
        %s252 = sand.u32 %s108, 1
        %s253 = smul.addr %s252, 8
        %s254 = scalar_lea.vmem [#allocation10], %s253
        // Predicated region
        $region41: #{tpu_custom_call.1} parent=31 // pred_check
          %p255 = pneg %p121
        $region42: #{tpu_custom_call.1} parent=31 // pred_check_branch
          %257 = sbr.rel (%p255) target = $region44
        $region43: #{tpu_custom_call.1} parent=31 // pred_region
          %258 = dma.done %s251, 128
        $region44: #{tpu_custom_call.1} parent=31 // pred_fallthru
          _
        %s259 = sand.u32 %s52, 1
        %s260 = scalar_lea.sflag [#allocation6], %s259
        %s261 = sand.u32 %s52, 1
        %s262 = smul.addr %s261, 8
        %s263 = scalar_lea.vmem [#allocation5], %s262
        %p264 = pneg %p65
        %p265 = pneg %p62
        %s266 = sand.u32 %s23, 1
        %s267 = scalar_lea.sflag [#allocation9], %s266
        %s268 = sand.u32 %s80, 1
        %s269 = smul.addr %s268, 8
        %s270 = scalar_lea.vmem [#allocation8], %s269
        %p271 = pneg %p93
        %p272 = pneg %p90
        %s273 = sand.u32 %s23, 1
        %s274 = scalar_lea.sflag [#allocation9], %s273
        %s275 = sand.u32 %s108, 1
        %s276 = smul.addr %s275, 8
        %s277 = scalar_lea.vmem [#allocation10], %s276
        %p278 = pneg %p121
        %p279 = pneg %p118
        %p280 = pneg %p149
        %p281 = pneg %p146
        %s282 = sand.u32 %s136, 1
        %s283 = scalar_lea.sflag [#allocation7], %s282
        %s284 = sand.u32 %s136, 1
        %s285 = smul.addr %s284, 8
        %s286 = scalar_lea.vmem [#allocation11], %s285
        %p288 = scmp.eq.s32.totalorder %s30, 0
        // Predicated region
        $region45: #{tpu_custom_call.1} parent=31 // pred_check
          %p289 = pneg %p288
        $region46: #{tpu_custom_call.1} parent=31 // pred_check_branch
          %291 = sbr.rel (%p289) target = $region48
        $region47: #{tpu_custom_call.1} parent=31 // pred_region
          %vm292 = vcmask 7168
          %293 = vst.msk [vmem:[#allocation2] sm:$0xff] %vm292, -1e+30
          %294 = vst.msk [vmem:[#allocation3] sm:$0xff] %vm292, 0.0
          %vm295 = vcmask 261120
          %296 = vst.msk [vmem:[#allocation4] sm:$0xff] %vm295, 0.0
        $region48: #{tpu_custom_call.1} parent=31 // pred_fallthru
          _
        %v297 = vld [vmem:[%s236] sm:$0xff]
        %v298 = vld [vmem:[%s245] sm:$0xff]
        %v299 = vld [vmem:[%s254] sm:$0xff]
        %v300 = vmul.f32 %v297, 0.17677669
        %v301 = vpack.c.bf16 %v300, %v300
        %v302 = vpack.c.bf16 %v298, %v298
        %v303 = vpack.c.bf16 %v299, %v299
        %vm304 = vcmask 261120
        %v306 = vsel %vm304, %v301, 0
        %v309 = vsel %vm304, %v302, 0
        %311 = vmatprep.subr.bf16.mxu0 0
        %312 = vmatpush1.bf16.xpose.msra.mxu0 0
        %313 = vmatprep.subr.bf16.mxu0 0
        %314 = vmatpush1.bf16.xpose.msra.mxu0 0
        %315 = vmatprep.subr.bf16.mxu0 0
        %316 = vmatpush1.bf16.xpose.msra.mxu0 0
        %317 = vmatprep.subr.bf16.mxu0 0
        %318 = vmatpush1.bf16.xpose.msra.mxu0 0
        %319 = vmatprep.subr.bf16.mxu0 0
        %320 = vmatpush1.bf16.xpose.msra.mxu0 0
        %321 = vmatprep.subr.bf16.mxu0 0
        %322 = vmatpush1.bf16.xpose.msra.mxu0 0
        %323 = vmatprep.subr.bf16.mxu0 0
        %324 = vmatpush1.bf16.xpose.msra.mxu0 0
        %325 = vmatprep.subr.bf16.mxu0 0
        %326 = vmatpush1.bf16.xpose.msra.mxu0 %v309
        %327 = vmatprep.subr.bf16.mxu0 0
        %328 = vmatpush2.bf16.xpose.msra.mxu0 0
        %329 = vmatprep.subr.bf16.mxu0 0
        %330 = vmatpush2.bf16.xpose.msra.mxu0 0
        %331 = vmatprep.subr.bf16.mxu0 0
        %332 = vmatpush2.bf16.xpose.msra.mxu0 0
        %333 = vmatprep.subr.bf16.mxu0 0
        %334 = vmatpush2.bf16.xpose.msra.mxu0 0
        %335 = vmatprep.subr.bf16.mxu0 0
        %336 = vmatpush2.bf16.xpose.msra.mxu0 0
        %337 = vmatprep.subr.bf16.mxu0 0
        %338 = vmatpush2.bf16.xpose.msra.mxu0 0
        %339 = vmatprep.subr.bf16.mxu0 0
        %340 = vmatpush2.bf16.xpose.msra.mxu0 0
        %341 = vmatprep.subr.bf16.mxu0 0
        %342 = vmatpush2.bf16.xpose.msra.mxu0 0
        %343 = vmatprep.mubr.bf16.mxu0 0
        %344 = vmatmul.mubr.bf16.gmra.mxu0 %v306
        %v345 = vpop.f32.mrf.mxu0
        %v346 = vadd.f32 0.0, %v345
        %v347 = vpop.f32.mrf.mxu0
        %v348 = vpop.f32.mrf.mxu0
        %v349 = vpop.f32.mrf.mxu0
        %350 = vdwg.mxu0
        %v351 = vld [vmem:[#allocation2] sm:$0xff]
        %vm352 = vcmask 64512
        %v353 = vsel %vm352, %v346, -inf
        %354 = vmax.xlane.f32.xlu0 %v353
        %v355 = vpop.xlane.xlu0 %354
        %v356 = vmax.f32 %v351, %v355
        %v357 = vsub.f32 %v351, %v356
        %v358 = vmul.f32 %v357, 1.442695
        %v359 = vpow.pop %v358
        %361 = vset.pattern.permute.xlu0 0
        %362 = vperm.xlu0 %361, %v356
        %v363 = vpop.permute.xlu0 %362
        %v365 = vsub.f32 %v346, %v363
        %v366 = vmul.f32 %v365, 1.442695
        %v367 = vpow.pop %v366
        %v368 = vld [vmem:[#allocation3] sm:$0xff]
        %v369 = vmul.f32 %v359, %v368
        %v370 = vsel %vm352, %v367, 0.0
        %371 = vadd.xlane.f32.xlu0 %v370
        %v372 = vpop.xlane.xlu0 %371
        %v373 = vadd.f32 %v369, %v372
        %vm374 = vcmask 7168
        %375 = vst.msk [vmem:[#allocation3] sm:$0xff] %vm374, %v373
        %v376 = vld [vmem:[#allocation4] sm:$0xff]
        %378 = vset.pattern.permute.xlu0 0
        %379 = vperm.xlu0 %378, %v359
        %v380 = vpop.permute.xlu0 %379
        %v382 = vmul.f32 %v380, %v376
        %v383 = vpack.c.bf16 %v367, %v367
        %v385 = vsel %vm352, %v383, 0
        %vm387 = vcmask 1043456
        %v389 = vsel %vm387, %v303, 0
        %391 = vmatprep.subr.bf16.mxu0 0
        %392 = vmatpush1.bf16.msra.mxu0 0
        %393 = vmatprep.subr.bf16.mxu0 0
        %394 = vmatpush1.bf16.msra.mxu0 0
        %395 = vmatprep.subr.bf16.mxu0 0
        %396 = vmatpush1.bf16.msra.mxu0 0
        %397 = vmatprep.subr.bf16.mxu0 0
        %398 = vmatpush1.bf16.msra.mxu0 0
        %399 = vmatprep.subr.bf16.mxu0 0
        %400 = vmatpush1.bf16.msra.mxu0 0
        %401 = vmatprep.subr.bf16.mxu0 0
        %402 = vmatpush1.bf16.msra.mxu0 0
        %403 = vmatprep.subr.bf16.mxu0 0
        %404 = vmatpush1.bf16.msra.mxu0 0
        %405 = vmatprep.subr.bf16.mxu0 0
        %406 = vmatpush1.bf16.msra.mxu0 %v389
        %407 = vmatprep.subr.bf16.mxu0 0
        %408 = vmatpush2.bf16.msra.mxu0 0
        %409 = vmatprep.subr.bf16.mxu0 0
        %410 = vmatpush2.bf16.msra.mxu0 0
        %411 = vmatprep.subr.bf16.mxu0 0
        %412 = vmatpush2.bf16.msra.mxu0 0
        %413 = vmatprep.subr.bf16.mxu0 0
        %414 = vmatpush2.bf16.msra.mxu0 0
        %415 = vmatprep.subr.bf16.mxu0 0
        %416 = vmatpush2.bf16.msra.mxu0 0
        %417 = vmatprep.subr.bf16.mxu0 0
        %418 = vmatpush2.bf16.msra.mxu0 0
        %419 = vmatprep.subr.bf16.mxu0 0
        %420 = vmatpush2.bf16.msra.mxu0 0
        %421 = vmatprep.subr.bf16.mxu0 0
        %422 = vmatpush2.bf16.msra.mxu0 0
        %423 = vmatprep.mubr.bf16.mxu0 0
        %424 = vmatmul.mubr.bf16.gmra.mxu0 %v385
        %v425 = vpop.f32.mrf.mxu0
        %v426 = vadd.f32 0.0, %v425
        %v427 = vpop.f32.mrf.mxu0
        %v428 = vpop.f32.mrf.mxu0
        %v429 = vpop.f32.mrf.mxu0
        %430 = vdwg.mxu0
        %v431 = vadd.f32 %v382, %v426
        %432 = vst.msk [vmem:[#allocation4] sm:$0xff] %vm304, %v431
        %433 = vst.msk [vmem:[#allocation2] sm:$0xff] %vm374, %v356
        // Predicated region
        $region49: #{tpu_custom_call.1} parent=31 // pred_check
          %p434 = pneg %p288
        $region50: #{tpu_custom_call.1} parent=31 // pred_check_branch
          %436 = sbr.rel (%p434) target = $region52
        $region51: #{tpu_custom_call.1} parent=31 // pred_region
          %v437 = vld [vmem:[#allocation3] sm:$0xff]
          %v438 = vrcp.pop %v437
          %v439 = vmul.f32 %v437, %v438
          %v440 = vsub.f32 2.0, %v439
          %v441 = vmul.f32 %v438, %v440
          %v442 = vld [vmem:[#allocation4] sm:$0xff]
          %444 = vset.pattern.permute.xlu0 0
          %445 = vperm.xlu0 %444, %v441
          %v446 = vpop.permute.xlu0 %445
          %v448 = vmul.f32 %v442, %v446
          %449 = vst.msk [vmem:[%s286] sm:$0xff] %vm304, %v448
        $region52: #{tpu_custom_call.1} parent=31 // pred_fallthru
          _
        %s450 = sand.u32 %s136, 1
        %s451 = scalar_lea.sflag [#allocation7], %s450
        %s452 = sand.u32 %s136, 1
        %s453 = smul.addr %s452, 8
        %s454 = scalar_lea.vmem [#allocation11], %s453
        // Predicated region
        $region53: #{tpu_custom_call.1} parent=31 // pred_check
          %p455 = pneg %p146
        $region54: #{tpu_custom_call.1} parent=31 // pred_check_branch
          %457 = sbr.rel (%p455) target = $region56
        $region55: #{tpu_custom_call.1} parent=31 // pred_region
          %s459 = ssub.s32 128, 128
          %460 = vsyncadd %s451, %s459
          %s461 = sadd.s32 %s29, %s28
          %s462 = smul.addr %s461, 128
          %s463 = scalar_lea.hbm %s3, %s462
          %s465 = sshll.u32 %s454, 4
          %s466 = int_to_ptr.vmem [resolvable:$true] %s465
          %468 = dma.vmem_to_hbm [thread:$0]  %s466, 128, %s463, %s451
        $region56: #{tpu_custom_call.1} parent=31 // pred_fallthru
          _
      $region32: #{tpu_custom_call.1} parent=5 // pred_fallthru
        _
      %p469 = scmp.le.s32.totalorder 2, %s18
      // Predicated region
      $region57: #{tpu_custom_call.1} parent=5 // pred_check
        %p470 = pneg %p469
      $region58: #{tpu_custom_call.1} parent=5 // pred_check_branch
        %472 = sbr.rel (%p470) target = $region60
      $region59: #{tpu_custom_call.1} parent=5 // pred_region
        %s473 = ssub.s32 %s18, 2
        // Predicated region
        $region61: #{tpu_custom_call.1} parent=59 // pred_check
          %p474 = pneg %p152
        $region62: #{tpu_custom_call.1} parent=59 // pred_check_branch
          %476 = sbr.rel (%p474) target = $region64
        $region63: #{tpu_custom_call.1} parent=59 // pred_region
          %s477 = sand.u32 %s137, 1
          %s478 = scalar_lea.sflag [#allocation7], %s477
          %s479 = sand.u32 %s137, 1
          %s480 = smul.addr %s479, 8
          %s481 = scalar_lea.vmem [#allocation11], %s480
          %482 = dma.done %s478, 128
        $region64: #{tpu_custom_call.1} parent=59 // pred_fallthru
          _
      $region60: #{tpu_custom_call.1} parent=5 // pred_fallthru
        _
    $region6: #{tpu_custom_call.1} parent=1 // loop_footer
      %s22 = sadd.s32 1, %s18
    $region7: #{tpu_custom_call.1} parent=1 // loop_footer_branch
      %17 = sbr.rel target = $region3
    $region8: #{tpu_custom_call.1} parent=1 // loop_exit
      _
    %483 = vsyncpa [#allocation6], 1
    %s484 = scalar_lea.sflag [#allocation6], 1
    %485 = vsyncpa %s484, 1
    %486 = vsyncpa [#allocation9], 1
    %s487 = scalar_lea.sflag [#allocation9], 1
    %488 = vsyncpa %s487, 1
    %489 = vsyncpa [#allocation7], 1
    %s490 = scalar_lea.sflag [#allocation7], 1
    %491 = vsyncpa %s490, 1

</llo_original>
